<compile_context>
chip_gen: v7x
topology: tpu7x:2x2x1
jax: 0.10.0
libtpu: 0.0.40
codegen_flags: <defaults>
</compile_context>

<pallas_src>
import jax
import jax.numpy as jnp
from jax.experimental import pallas as pl
from jax.experimental.pallas import tpu as pltpu

LANE = 128      # vreg lane width
SUBLANE = 8     # f32 sublane count


def _round_up(x, m):
    return ((x + m - 1) // m) * m


def _pad2(x, rows, cols):
    """Zero-pad a 2-D array up to (rows, cols)."""
    r, c = x.shape
    return jnp.pad(x, ((0, rows - r), (0, cols - c)))


def attr_decoder_kernel(a_ref, h_ref, w1_ref, b1_ref, w2_ref, b2_ref, o_ref):
    """Fused: relu(A @ (relu(A @ (H @ W1) + b1) @ W2) + b2), all in VMEM."""
    # Narrow the MXU operands to bf16 (binary adjacency is exact in bf16);
    # keep f32 accumulation and all element-wise work (bias, ReLU) in f32.
    a = a_ref[...].astype(jnp.bfloat16)
    h = h_ref[...].astype(jnp.bfloat16)
    w1 = w1_ref[...].astype(jnp.bfloat16)
    w2 = w2_ref[...].astype(jnp.bfloat16)

    # ---- Layer 1: relu(A @ (H @ W1) + b1) -------------------------------
    z1 = jnp.dot(h, w1, preferred_element_type=jnp.float32)
    y1 = jnp.dot(a, z1.astype(jnp.bfloat16),
                 preferred_element_type=jnp.float32) + b1_ref[...]
    x1 = jnp.maximum(y1, 0.0)

    # Dropout: F.dropout(x, p, training=False) is the identity at inference.
    # TODO(synk): training-mode dropout would use pltpu.prng_seed +
    # pltpu.stateful_bernoulli here; eval semantics kept.

    # ---- Layer 2: relu(A @ (x1 @ W2) + b2) ------------------------------
    z2 = jnp.dot(x1.astype(jnp.bfloat16), w2,
                 preferred_element_type=jnp.float32)
    y2 = jnp.dot(a, z2.astype(jnp.bfloat16),
                 preferred_element_type=jnp.float32) + b2_ref[...]
    o_ref[...] = jnp.maximum(y2, 0.0)


def attribute_decoder_forward(adj, h, params, dropout_p=0.5, training=False):
    """Forward pass of AttributeDecoder.

    adj : [N, N]   dense adjacency of graph g
    h   : [N, nhid * view_num]
    """
    del dropout_p, training  # identity at inference time

    n, fin1 = h.shape
    fout1 = params["w1"].shape[1]
    fout2 = params["w2"].shape[1]

    # Pad node dim to sublane multiple and every feature dim to 128 lanes.
    n_p = _round_up(n, SUBLANE)
    fin1_p = _round_up(fin1, LANE)
    fout1_p = _round_up(fout1, LANE)
    fout2_p = _round_up(fout2, LANE)

    a_p = _pad2(adj, n_p, n_p)
    h_p = _pad2(h, n_p, fin1_p)
    w1_p = _pad2(params["w1"], fin1_p, fout1_p)
    b1_p = _pad2(params["b1"], 1, fout1_p)
    w2_p = _pad2(params["w2"], fout1_p, fout2_p)
    b2_p = _pad2(params["b2"], 1, fout2_p)

    flops = (2 * n_p * fin1_p * fout1_p          # H @ W1
             + 2 * n_p * n_p * fout1_p           # A @ z1
             + 2 * n_p * fout1_p * fout2_p       # x1 @ W2
             + 2 * n_p * n_p * fout2_p)          # A @ z2
    bytes_accessed = 4 * (n_p * n_p + n_p * fin1_p + fin1_p * fout1_p
                          + fout1_p + fout1_p * fout2_p + fout2_p
                          + n_p * fout2_p)

    vmem_spec = pl.BlockSpec(memory_space=pltpu.MemorySpace.VMEM)

    # Whole problem is VMEM-resident: no grid, no index_maps.
    # TODO(synk): for large N, tile rows of A with a grid, keep Z = H @ W in a
    # persistent VMEM scratch, and mark the row axis "parallel" for v7x.
    out_p = pl.pallas_call(
        attr_decoder_kernel,
        out_shape=jax.ShapeDtypeStruct((n_p, fout2_p), jnp.float32),
        in_specs=[vmem_spec] * 6,
        out_specs=vmem_spec,
        cost_estimate=pl.CostEstimate(
            flops=flops, transcendentals=0, bytes_accessed=bytes_accessed),
    )(a_p, h_p, w1_p, b1_p, w2_p, b2_p)

    return out_p[:n, :fout2]


def init_params(key, nfeat, nhid, view_num):
    """Deterministic glorot-uniform-ish init matching GraphConv param shapes."""
    k1, k2 = jax.random.split(key)
    fin1, fout1 = nhid * view_num, nhid
    fin2, fout2 = nhid, nfeat
    s1 = jnp.sqrt(6.0 / (fin1 + fout1))
    s2 = jnp.sqrt(6.0 / (fin2 + fout2))
    w1 = jax.random.uniform(k1, (fin1, fout1), jnp.float32, -s1, s1)
    w2 = jax.random.uniform(k2, (fin2, fout2), jnp.float32, -s2, s2)
    b1 = jnp.zeros((1, fout1), jnp.float32)
    b2 = jnp.zeros((1, fout2), jnp.float32)
    return {"w1": w1, "b1": b1, "w2": w2, "b2": b2}


def _ref_forward_bf16(adj, h, params):
    """Pure-JAX reference mirroring the kernel's bf16-operand / f32-acc math."""
    a = adj.astype(jnp.bfloat16)
    hb = h.astype(jnp.bfloat16)
    w1 = params["w1"].astype(jnp.bfloat16)
    w2 = params["w2"].astype(jnp.bfloat16)
    z1 = jnp.dot(hb, w1, preferred_element_type=jnp.float32)
    x1 = jnp.maximum(
        jnp.dot(a, z1.astype(jnp.bfloat16),
                preferred_element_type=jnp.float32) + params["b1"], 0.0)
    z2 = jnp.dot(x1.astype(jnp.bfloat16), w2,
                 preferred_element_type=jnp.float32)
    return jnp.maximum(
        jnp.dot(a, z2.astype(jnp.bfloat16),
                preferred_element_type=jnp.float32) + params["b2"], 0.0)


if __name__ == "__main__":
    # Small shapes consistent with the module.
    N = 8            # number of graph nodes
    nfeat = 16       # reconstructed attribute dim
    nhid = 32        # hidden dim
    view_num = 2     # number of views

    key = jax.random.PRNGKey(0)
    k_adj, k_h, k_param = jax.random.split(key, 3)

    # Dense adjacency with self loops (binary, float32).
    adj = (jax.random.uniform(k_adj, (N, N)) < 0.3).astype(jnp.float32)
    adj = jnp.maximum(adj, jnp.eye(N, dtype=jnp.float32))

    # Node embeddings coming out of the multi-view encoder: [N, nhid*view_num].
    h = jax.random.normal(k_h, (N, nhid * view_num), jnp.float32)

    params = init_params(k_param, nfeat, nhid, view_num)

    out = attribute_decoder_forward(adj, h, params)
    out = jax.block_until_ready(out)
    assert out.shape == (N, nfeat)

    # Reference matching the kernel's mixed-precision math.
    ref_bf16 = _ref_forward_bf16(adj, h, params)
    assert jnp.allclose(out, ref_bf16, atol=1e-3, rtol=1e-3)

    # Loose sanity check against the original full-f32 semantics.
    ref1 = jnp.maximum(adj @ (h @ params["w1"]) + params["b1"], 0.0)
    ref_f32 = jnp.maximum(adj @ (ref1 @ params["w2"]) + params["b2"], 0.0)
    assert jnp.allclose(out, ref_f32, atol=1e-1, rtol=1e-1)

    print("KERNEL_OK")
</pallas_src>

<mosaic_0001>
module attributes {stable_mosaic.version = 11 : i64} {
  func.func @attr_decoder_kernel(%arg0: memref<8x8xf32, #tpu.memory_space<vmem>>, %arg1: memref<8x128xf32, #tpu.memory_space<vmem>>, %arg2: memref<128x128xf32, #tpu.memory_space<vmem>>, %arg3: memref<1x128xf32, #tpu.memory_space<vmem>>, %arg4: memref<128x128xf32, #tpu.memory_space<vmem>>, %arg5: memref<1x128xf32, #tpu.memory_space<vmem>>, %arg6: memref<8x128xf32, #tpu.memory_space<vmem>>) attributes {dimension_semantics = [], scalar_prefetch = 0 : i64, scratch_operands = 0 : i64, tpu.core_type = #tpu.core_type<tc>} {
    %c0 = arith.constant 0 : index
    %c0_0 = arith.constant 0 : index
    %0 = vector.load %arg0[%c0, %c0_0] : memref<8x8xf32, #tpu.memory_space<vmem>>, vector<8x8xf32>
    %1 = arith.truncf %0 : vector<8x8xf32> to vector<8x8xbf16>
    %c0_1 = arith.constant 0 : index
    %c0_2 = arith.constant 0 : index
    %2 = vector.load %arg1[%c0_1, %c0_2] : memref<8x128xf32, #tpu.memory_space<vmem>>, vector<8x128xf32>
    %3 = arith.truncf %2 : vector<8x128xf32> to vector<8x128xbf16>
    %c0_3 = arith.constant 0 : index
    %c0_4 = arith.constant 0 : index
    %4 = vector.load %arg2[%c0_3, %c0_4] : memref<128x128xf32, #tpu.memory_space<vmem>>, vector<128x128xf32>
    %5 = arith.truncf %4 : vector<128x128xf32> to vector<128x128xbf16>
    %c0_5 = arith.constant 0 : index
    %c0_6 = arith.constant 0 : index
    %6 = vector.load %arg4[%c0_5, %c0_6] : memref<128x128xf32, #tpu.memory_space<vmem>>, vector<128x128xf32>
    %7 = arith.truncf %6 : vector<128x128xf32> to vector<128x128xbf16>
    %cst = arith.constant dense<0.000000e+00> : vector<8x128xf32>
    %8 = tpu.matmul %3, %5, %cst {dimension_numbers = #tpu.dot_dimension_numbers<[1], [0], [0], [1], [0, 0, 1, 1], [], []>} : vector<8x128xbf16>, vector<128x128xbf16>, vector<8x128xf32> -> vector<8x128xf32>
    %9 = arith.truncf %8 : vector<8x128xf32> to vector<8x128xbf16>
    %cst_7 = arith.constant dense<0.000000e+00> : vector<8x128xf32>
    %10 = tpu.matmul %1, %9, %cst_7 {dimension_numbers = #tpu.dot_dimension_numbers<[1], [0], [0], [1], [0, 0, 1, 1], [], []>} : vector<8x8xbf16>, vector<8x128xbf16>, vector<8x128xf32> -> vector<8x128xf32>
    %c0_8 = arith.constant 0 : index
    %c0_9 = arith.constant 0 : index
    %11 = vector.load %arg3[%c0_8, %c0_9] : memref<1x128xf32, #tpu.memory_space<vmem>>, vector<1x128xf32>
    %12 = vector.broadcast %11 : vector<1x128xf32> to vector<8x128xf32>
    %13 = arith.addf %10, %12 : vector<8x128xf32>
    %cst_10 = arith.constant 0.000000e+00 : f32
    %14 = vector.broadcast %cst_10 : f32 to vector<8x128xf32>
    %15 = arith.maximumf %13, %14 : vector<8x128xf32>
    %16 = arith.truncf %15 : vector<8x128xf32> to vector<8x128xbf16>
    %cst_11 = arith.constant dense<0.000000e+00> : vector<8x128xf32>
    %17 = tpu.matmul %16, %7, %cst_11 {dimension_numbers = #tpu.dot_dimension_numbers<[1], [0], [0], [1], [0, 0, 1, 1], [], []>} : vector<8x128xbf16>, vector<128x128xbf16>, vector<8x128xf32> -> vector<8x128xf32>
    %18 = arith.truncf %17 : vector<8x128xf32> to vector<8x128xbf16>
    %cst_12 = arith.constant dense<0.000000e+00> : vector<8x128xf32>
    %19 = tpu.matmul %1, %18, %cst_12 {dimension_numbers = #tpu.dot_dimension_numbers<[1], [0], [0], [1], [0, 0, 1, 1], [], []>} : vector<8x8xbf16>, vector<8x128xbf16>, vector<8x128xf32> -> vector<8x128xf32>
    %c0_13 = arith.constant 0 : index
    %c0_14 = arith.constant 0 : index
    %20 = vector.load %arg5[%c0_13, %c0_14] : memref<1x128xf32, #tpu.memory_space<vmem>>, vector<1x128xf32>
    %21 = vector.broadcast %20 : vector<1x128xf32> to vector<8x128xf32>
    %22 = arith.addf %19, %21 : vector<8x128xf32>
    %cst_15 = arith.constant 0.000000e+00 : f32
    %23 = vector.broadcast %cst_15 : f32 to vector<8x128xf32>
    %24 = arith.maximumf %22, %23 : vector<8x128xf32>
    %c0_16 = arith.constant 0 : index
    %c0_17 = arith.constant 0 : index
    %25 = vector.load %arg6[%c0_16, %c0_17] : memref<8x128xf32, #tpu.memory_space<vmem>>, vector<8x128xf32>
    tpu.vector_store %arg6[%c0_16, %c0_17], %24 {strides = array<i32>} : memref<8x128xf32, #tpu.memory_space<vmem>>, vector<8x128xf32>,
    return
  }
}

</mosaic_0001>

<llo_original>
// kernel: tpu_custom_call.1
$region0: #{tpu_custom_call.1}
  #allocation0 [shape = 'u32[]', space=smem, size = 0x4, offset = 0x4, fixed_abs, tag = 'smem constant byte address 0x4 - core index']
  #allocation1 [shape = 'u32[144,128]{1,0:T(1,128)}', space=vmem, size = 0x12000, scoped, tag = 'internal scratch']
  %s0 = inlined_call_operand.hbm [shape: f32[8,8], index: 0, kind: input, shape index: {}]
  %s1 = inlined_call_operand.hbm [shape: f32[8,128], index: 1, kind: input, shape index: {}]
  %s2 = inlined_call_operand.hbm [shape: f32[128,128], index: 2, kind: input, shape index: {}]
  %s3 = inlined_call_operand.vmem [shape: f32[1,128], index: 3, kind: input, shape index: {}]
  %s4 = inlined_call_operand.hbm [shape: f32[128,128], index: 4, kind: input, shape index: {}]
  %s5 = inlined_call_operand.vmem [shape: f32[1,128], index: 5, kind: input, shape index: {}]
  %s6 = inlined_call_operand.hbm [shape: f32[8,128], index: 6, kind: output, shape index: {}]
  %s7 = sld [smem:[#allocation0]]
  $region50: #{tpu_custom_call.1} parent=0
    _
  %s9 = ssub.s32 1, %s7
  %s10 = scalar_select 0, %s9, %s7
  $region1: #{tpu_custom_call.1} parent=0
    #allocation2 [shape = 'u8[4096]{0}', space=vmem, size = 0x1000, scoped, tag = 'input window, operand 0, single buffered']
    #allocation3 [shape = 's32[1]{0}', space=sflag, size = 0x4, scoped, tag = 'scoped memory for tpu_custom_call.1']
    #allocation4 [shape = 's32[1]{0}', space=sflag, size = 0x4, scoped, tag = 'scoped memory for tpu_custom_call.1']
    #allocation5 [shape = 'u8[4096]{0}', space=vmem, size = 0x1000, scoped, tag = 'input window, operand 1, single buffered']
    #allocation6 [shape = 's32[1]{0}', space=sflag, size = 0x4, scoped, tag = 'scoped memory for tpu_custom_call.1']
    #allocation7 [shape = 'u8[65536]{0}', space=vmem, size = 0x10000, scoped, tag = 'input window, operand 2, single buffered']
    #allocation8 [shape = 'u8[65536]{0}', space=vmem, size = 0x10000, scoped, tag = 'input window, operand 4, single buffered']
    #allocation9 [shape = 's32[1]{0}', space=sflag, size = 0x4, scoped, tag = 'scoped memory for tpu_custom_call.1']
    #allocation10 [shape = 'u8[4096]{0}', space=vmem, size = 0x1000, scoped, tag = 'output window, operand 0, single buffered']
    %11 = vsyncpa [#allocation3], 0
    %12 = vsyncpa [#allocation6], 0
    %13 = vsyncpa [#allocation9], 0
    %14 = vsyncpa [#allocation4], 0
    // Predicated region
    $region2: #{tpu_custom_call.1} parent=1 // pred_check
      _
    $region3: #{tpu_custom_call.1} parent=1 // pred_check_branch
      %16 = sbr.rel (0) target = $region5
    $region4: #{tpu_custom_call.1} parent=1 // pred_region
      %s18 = ssub.s32 128, 128
      %19 = vsyncadd [#allocation3], %s18
      %s21 = sshll.u32 [#allocation2], 4
      %s22 = int_to_ptr.vmem [resolvable:$true] %s21
      %24 = dma.hbm_to_vmem [thread:$0]  %s0, 128, %s22, [#allocation3]
    $region5: #{tpu_custom_call.1} parent=1 // pred_fallthru
      _
    // Predicated region
    $region6: #{tpu_custom_call.1} parent=1 // pred_check
      _
    $region7: #{tpu_custom_call.1} parent=1 // pred_check_branch
      %26 = sbr.rel (0) target = $region9
    $region8: #{tpu_custom_call.1} parent=1 // pred_region
      %s28 = ssub.s32 128, 128
      %29 = vsyncadd [#allocation6], %s28
      %s31 = sshll.u32 [#allocation5], 4
      %s32 = int_to_ptr.vmem [resolvable:$true] %s31
      %34 = dma.hbm_to_vmem [thread:$0]  %s1, 128, %s32, [#allocation6]
    $region9: #{tpu_custom_call.1} parent=1 // pred_fallthru
      _
    // Predicated region
    $region10: #{tpu_custom_call.1} parent=1 // pred_check
      _
    $region11: #{tpu_custom_call.1} parent=1 // pred_check_branch
      %36 = sbr.rel (0) target = $region13
    $region12: #{tpu_custom_call.1} parent=1 // pred_region
      %s38 = ssub.s32 2048, 2048
      %39 = vsyncadd [#allocation6], %s38
      %s40 = sshll.u32 [#allocation7], 4
      %s41 = int_to_ptr.vmem [resolvable:$true] %s40
      %46 = dma.hbm_to_vmem [thread:$0]  %s2, 2048, %s41, [#allocation6], 128, 128, 8
    $region13: #{tpu_custom_call.1} parent=1 // pred_fallthru
      _
    // Predicated region
    $region14: #{tpu_custom_call.1} parent=1 // pred_check
      _
    $region15: #{tpu_custom_call.1} parent=1 // pred_check_branch
      %48 = sbr.rel (0) target = $region17
    $region16: #{tpu_custom_call.1} parent=1 // pred_region
      _
    $region17: #{tpu_custom_call.1} parent=1 // pred_fallthru
      _
    // Predicated region
    $region18: #{tpu_custom_call.1} parent=1 // pred_check
      _
    $region19: #{tpu_custom_call.1} parent=1 // pred_check_branch
      %50 = sbr.rel (0) target = $region21
    $region20: #{tpu_custom_call.1} parent=1 // pred_region
      %s52 = ssub.s32 2048, 2048
      %53 = vsyncadd [#allocation9], %s52
      %s54 = sshll.u32 [#allocation8], 4
      %s55 = int_to_ptr.vmem [resolvable:$true] %s54
      %60 = dma.hbm_to_vmem [thread:$0]  %s4, 2048, %s55, [#allocation9], 128, 128, 8
    $region21: #{tpu_custom_call.1} parent=1 // pred_fallthru
      _
    // Predicated region
    $region22: #{tpu_custom_call.1} parent=1 // pred_check
      _
    $region23: #{tpu_custom_call.1} parent=1 // pred_check_branch
      %62 = sbr.rel (0) target = $region25
    $region24: #{tpu_custom_call.1} parent=1 // pred_region
      _
    $region25: #{tpu_custom_call.1} parent=1 // pred_fallthru
      _
    // Predicated region
    $region26: #{tpu_custom_call.1} parent=1 // pred_check
      _
    $region27: #{tpu_custom_call.1} parent=1 // pred_check_branch
      %64 = sbr.rel (0) target = $region29
    $region28: #{tpu_custom_call.1} parent=1 // pred_region
      %65 = dma.done [#allocation3], 128
    $region29: #{tpu_custom_call.1} parent=1 // pred_fallthru
      _
    // Predicated region
    $region30: #{tpu_custom_call.1} parent=1 // pred_check
      _
    $region31: #{tpu_custom_call.1} parent=1 // pred_check_branch
      %67 = sbr.rel (0) target = $region33
    $region32: #{tpu_custom_call.1} parent=1 // pred_region
      %68 = dma.done [#allocation6], 128
    $region33: #{tpu_custom_call.1} parent=1 // pred_fallthru
      _
    // Predicated region
    $region34: #{tpu_custom_call.1} parent=1 // pred_check
      _
    $region35: #{tpu_custom_call.1} parent=1 // pred_check_branch
      %70 = sbr.rel (0) target = $region37
    $region36: #{tpu_custom_call.1} parent=1 // pred_region
      %71 = dma.done [#allocation6], 2048
    $region37: #{tpu_custom_call.1} parent=1 // pred_fallthru
      _
    // Predicated region
    $region38: #{tpu_custom_call.1} parent=1 // pred_check
      _
    $region39: #{tpu_custom_call.1} parent=1 // pred_check_branch
      %73 = sbr.rel (0) target = $region41
    $region40: #{tpu_custom_call.1} parent=1 // pred_region
      %74 = dma.done [#allocation9], 2048
    $region41: #{tpu_custom_call.1} parent=1 // pred_fallthru
      _
    %v76 = vld [vmem:[#allocation2] sm:$0xff]
    %v77 = vpack.c.bf16 %v76, %v76
    %v78 = vld [vmem:[#allocation5] sm:$0xff]
    %v79 = vpack.c.bf16 %v78, %v78
    %v80 = vld [vmem:[#allocation7] sm:$0xff]
    %v81 = vld [vmem:[#allocation7 + $0x8] sm:$0xff]
    %v82 = vld [vmem:[#allocation7 + $0x10] sm:$0xff]
    %v83 = vld [vmem:[#allocation7 + $0x18] sm:$0xff]
    %v84 = vld [vmem:[#allocation7 + $0x20] sm:$0xff]
    %v85 = vld [vmem:[#allocation7 + $0x28] sm:$0xff]
    %v86 = vld [vmem:[#allocation7 + $0x30] sm:$0xff]
    %v87 = vld [vmem:[#allocation7 + $0x38] sm:$0xff]
    %v88 = vld [vmem:[#allocation7 + $0x40] sm:$0xff]
    %v89 = vld [vmem:[#allocation7 + $0x48] sm:$0xff]
    %v90 = vld [vmem:[#allocation7 + $0x50] sm:$0xff]
    %v91 = vld [vmem:[#allocation7 + $0x58] sm:$0xff]
    %v92 = vld [vmem:[#allocation7 + $0x60] sm:$0xff]
    %v93 = vld [vmem:[#allocation7 + $0x68] sm:$0xff]
    %v94 = vld [vmem:[#allocation7 + $0x70] sm:$0xff]
    %v95 = vld [vmem:[#allocation7 + $0x78] sm:$0xff]
    %v96 = vpack.c.bf16 %v81, %v80
    %v97 = vpack.c.bf16 %v83, %v82
    %v98 = vpack.c.bf16 %v85, %v84
    %v99 = vpack.c.bf16 %v87, %v86
    %v100 = vpack.c.bf16 %v89, %v88
    %v101 = vpack.c.bf16 %v91, %v90
    %v102 = vpack.c.bf16 %v93, %v92
    %v103 = vpack.c.bf16 %v95, %v94
    %v104 = vld [vmem:[#allocation8] sm:$0xff]
    %v105 = vld [vmem:[#allocation8 + $0x8] sm:$0xff]
    %v106 = vld [vmem:[#allocation8 + $0x10] sm:$0xff]
    %v107 = vld [vmem:[#allocation8 + $0x18] sm:$0xff]
    %v108 = vld [vmem:[#allocation8 + $0x20] sm:$0xff]
    %v109 = vld [vmem:[#allocation8 + $0x28] sm:$0xff]
    %v110 = vld [vmem:[#allocation8 + $0x30] sm:$0xff]
    %v111 = vld [vmem:[#allocation8 + $0x38] sm:$0xff]
    %v112 = vld [vmem:[#allocation8 + $0x40] sm:$0xff]
    %v113 = vld [vmem:[#allocation8 + $0x48] sm:$0xff]
    %v114 = vld [vmem:[#allocation8 + $0x50] sm:$0xff]
    %v115 = vld [vmem:[#allocation8 + $0x58] sm:$0xff]
    %v116 = vld [vmem:[#allocation8 + $0x60] sm:$0xff]
    %v117 = vld [vmem:[#allocation8 + $0x68] sm:$0xff]
    %v118 = vld [vmem:[#allocation8 + $0x70] sm:$0xff]
    %v119 = vld [vmem:[#allocation8 + $0x78] sm:$0xff]
    %v120 = vpack.c.bf16 %v105, %v104
    %v121 = vpack.c.bf16 %v107, %v106
    %v122 = vpack.c.bf16 %v109, %v108
    %v123 = vpack.c.bf16 %v111, %v110
    %v124 = vpack.c.bf16 %v113, %v112
    %v125 = vpack.c.bf16 %v115, %v114
    %v126 = vpack.c.bf16 %v117, %v116
    %v127 = vpack.c.bf16 %v119, %v118
    %128 = vmatprep.subr.bf16.mxu0 0
    %129 = vmatpush1.bf16.msra.mxu0 %v96
    %130 = vmatprep.subr.bf16.mxu0 0
    %131 = vmatpush1.bf16.msra.mxu0 %v97
    %132 = vmatprep.subr.bf16.mxu0 0
    %133 = vmatpush1.bf16.msra.mxu0 %v98
    %134 = vmatprep.subr.bf16.mxu0 0
    %135 = vmatpush1.bf16.msra.mxu0 %v99
    %136 = vmatprep.subr.bf16.mxu0 0
    %137 = vmatpush1.bf16.msra.mxu0 %v100
    %138 = vmatprep.subr.bf16.mxu0 0
    %139 = vmatpush1.bf16.msra.mxu0 %v101
    %140 = vmatprep.subr.bf16.mxu0 0
    %141 = vmatpush1.bf16.msra.mxu0 %v102
    %142 = vmatprep.subr.bf16.mxu0 0
    %143 = vmatpush1.bf16.msra.mxu0 %v103
    %144 = vmatprep.subr.bf16.mxu0 0
    %145 = vmatpush1.bf16.msra.mxu0 0
    %146 = vmatprep.subr.bf16.mxu0 0
    %147 = vmatpush1.bf16.msra.mxu0 0
    %148 = vmatprep.subr.bf16.mxu0 0
    %149 = vmatpush1.bf16.msra.mxu0 0
    %150 = vmatprep.subr.bf16.mxu0 0
    %151 = vmatpush1.bf16.msra.mxu0 0
    %152 = vmatprep.subr.bf16.mxu0 0
    %153 = vmatpush1.bf16.msra.mxu0 0
    %154 = vmatprep.subr.bf16.mxu0 0
    %155 = vmatpush1.bf16.msra.mxu0 0
    %156 = vmatprep.subr.bf16.mxu0 0
    %157 = vmatpush1.bf16.msra.mxu0 0
    %158 = vmatprep.subr.bf16.mxu0 0
    %159 = vmatpush1.bf16.msra.mxu0 0
    %160 = vmatprep.mubr.bf16.mxu0 0
    %161 = vmatmul.mubr.bf16.gmra.mrb[0].mxu0 %v79
    %v162 = vpop.f32.mrb[0].mxu0
    %v163 = vadd.f32 0.0, %v162
    %v164 = vpop.f32.mrb[0].mxu0
    %v165 = vpop.f32.mrb[0].mxu0
    %v166 = vpop.f32.mrb[0].mxu0
    %167 = vdwg.mxu0
    %v168 = vpack.c.bf16 %v163, %v163
    %v169 = vld [vmem:[%s3] sm:$0x1]
    %v171 = vlaneseq
    %v172 = vshrl.u32 %v171, 7
    %v173 = vsub.s32 0, %v172
    %v174 = vrot.slane %v169, %v173
    %vm176 = vcmask 64512
    %v178 = vsel %vm176, %v77, 0
    %vm180 = vcmask 1043456
    %v182 = vsel %vm180, %v168, 0
    %184 = vmatprep.subr.bf16.mxu0 0
    %185 = vmatpush1.bf16.msra.mxu0 %v182
    %186 = vmatprep.subr.bf16.mxu0 0
    %187 = vmatpush1.bf16.msra.mxu0 0
    %188 = vmatprep.subr.bf16.mxu0 0
    %189 = vmatpush1.bf16.msra.mxu0 0
    %190 = vmatprep.subr.bf16.mxu0 0
    %191 = vmatpush1.bf16.msra.mxu0 0
    %192 = vmatprep.subr.bf16.mxu0 0
    %193 = vmatpush1.bf16.msra.mxu0 0
    %194 = vmatprep.subr.bf16.mxu0 0
    %195 = vmatpush1.bf16.msra.mxu0 0
    %196 = vmatprep.subr.bf16.mxu0 0
    %197 = vmatpush1.bf16.msra.mxu0 0
    %198 = vmatprep.subr.bf16.mxu0 0
    %199 = vmatpush1.bf16.msra.mxu0 0
    %200 = vmatprep.subr.bf16.mxu0 0
    %201 = vmatpush1.bf16.msra.mxu0 0
    %202 = vmatprep.subr.bf16.mxu0 0
    %203 = vmatpush1.bf16.msra.mxu0 0
    %204 = vmatprep.subr.bf16.mxu0 0
    %205 = vmatpush1.bf16.msra.mxu0 0
    %206 = vmatprep.subr.bf16.mxu0 0
    %207 = vmatpush1.bf16.msra.mxu0 0
    %208 = vmatprep.subr.bf16.mxu0 0
    %209 = vmatpush1.bf16.msra.mxu0 0
    %210 = vmatprep.subr.bf16.mxu0 0
    %211 = vmatpush1.bf16.msra.mxu0 0
    %212 = vmatprep.subr.bf16.mxu0 0
    %213 = vmatpush1.bf16.msra.mxu0 0
    %214 = vmatprep.subr.bf16.mxu0 0
    %215 = vmatpush1.bf16.msra.mxu0 0
    %216 = vmatprep.mubr.bf16.mxu0 0
    %217 = vmatmul.mubr.bf16.gmra.mrb[0].mxu0 %v178
    %v218 = vpop.f32.mrb[0].mxu0
    %v219 = vadd.f32 %v174, %v218
    %v220 = vpop.f32.mrb[0].mxu0
    %v221 = vpop.f32.mrb[0].mxu0
    %v222 = vpop.f32.mrb[0].mxu0
    %223 = vdwg.mxu0
    %v224 = vmax.f32 %v219, 0.0
    %v225 = vpack.c.bf16 %v224, %v224
    %226 = vmatprep.subr.bf16.mxu0 0
    %227 = vmatpush1.bf16.msra.mxu0 %v120
    %228 = vmatprep.subr.bf16.mxu0 0
    %229 = vmatpush1.bf16.msra.mxu0 %v121
    %230 = vmatprep.subr.bf16.mxu0 0
    %231 = vmatpush1.bf16.msra.mxu0 %v122
    %232 = vmatprep.subr.bf16.mxu0 0
    %233 = vmatpush1.bf16.msra.mxu0 %v123
    %234 = vmatprep.subr.bf16.mxu0 0
    %235 = vmatpush1.bf16.msra.mxu0 %v124
    %236 = vmatprep.subr.bf16.mxu0 0
    %237 = vmatpush1.bf16.msra.mxu0 %v125
    %238 = vmatprep.subr.bf16.mxu0 0
    %239 = vmatpush1.bf16.msra.mxu0 %v126
    %240 = vmatprep.subr.bf16.mxu0 0
    %241 = vmatpush1.bf16.msra.mxu0 %v127
    %242 = vmatprep.subr.bf16.mxu0 0
    %243 = vmatpush1.bf16.msra.mxu0 0
    %244 = vmatprep.subr.bf16.mxu0 0
    %245 = vmatpush1.bf16.msra.mxu0 0
    %246 = vmatprep.subr.bf16.mxu0 0
    %247 = vmatpush1.bf16.msra.mxu0 0
    %248 = vmatprep.subr.bf16.mxu0 0
    %249 = vmatpush1.bf16.msra.mxu0 0
    %250 = vmatprep.subr.bf16.mxu0 0
    %251 = vmatpush1.bf16.msra.mxu0 0
    %252 = vmatprep.subr.bf16.mxu0 0
    %253 = vmatpush1.bf16.msra.mxu0 0
    %254 = vmatprep.subr.bf16.mxu0 0
    %255 = vmatpush1.bf16.msra.mxu0 0
    %256 = vmatprep.subr.bf16.mxu0 0
    %257 = vmatpush1.bf16.msra.mxu0 0
    %258 = vmatprep.mubr.bf16.mxu0 0
    %259 = vmatmul.mubr.bf16.gmra.mrb[0].mxu0 %v225
    %v260 = vpop.f32.mrb[0].mxu0
    %v261 = vadd.f32 0.0, %v260
    %v262 = vpop.f32.mrb[0].mxu0
    %v263 = vpop.f32.mrb[0].mxu0
    %v264 = vpop.f32.mrb[0].mxu0
    %265 = vdwg.mxu0
    %v266 = vpack.c.bf16 %v261, %v261
    %v267 = vld [vmem:[%s5] sm:$0x1]
    %v269 = vlaneseq
    %v270 = vshrl.u32 %v269, 7
    %v271 = vsub.s32 0, %v270
    %v272 = vrot.slane %v267, %v271
    %v275 = vsel %vm180, %v266, 0
    %277 = vmatprep.subr.bf16.mxu0 0
    %278 = vmatpush1.bf16.msra.mxu0 %v275
    %279 = vmatprep.subr.bf16.mxu0 0
    %280 = vmatpush1.bf16.msra.mxu0 0
    %281 = vmatprep.subr.bf16.mxu0 0
    %282 = vmatpush1.bf16.msra.mxu0 0
    %283 = vmatprep.subr.bf16.mxu0 0
    %284 = vmatpush1.bf16.msra.mxu0 0
    %285 = vmatprep.subr.bf16.mxu0 0
    %286 = vmatpush1.bf16.msra.mxu0 0
    %287 = vmatprep.subr.bf16.mxu0 0
    %288 = vmatpush1.bf16.msra.mxu0 0
    %289 = vmatprep.subr.bf16.mxu0 0
    %290 = vmatpush1.bf16.msra.mxu0 0
    %291 = vmatprep.subr.bf16.mxu0 0
    %292 = vmatpush1.bf16.msra.mxu0 0
    %293 = vmatprep.subr.bf16.mxu0 0
    %294 = vmatpush1.bf16.msra.mxu0 0
    %295 = vmatprep.subr.bf16.mxu0 0
    %296 = vmatpush1.bf16.msra.mxu0 0
    %297 = vmatprep.subr.bf16.mxu0 0
    %298 = vmatpush1.bf16.msra.mxu0 0
    %299 = vmatprep.subr.bf16.mxu0 0
    %300 = vmatpush1.bf16.msra.mxu0 0
    %301 = vmatprep.subr.bf16.mxu0 0
    %302 = vmatpush1.bf16.msra.mxu0 0
    %303 = vmatprep.subr.bf16.mxu0 0
    %304 = vmatpush1.bf16.msra.mxu0 0
    %305 = vmatprep.subr.bf16.mxu0 0
    %306 = vmatpush1.bf16.msra.mxu0 0
    %307 = vmatprep.subr.bf16.mxu0 0
    %308 = vmatpush1.bf16.msra.mxu0 0
    %309 = vmatprep.mubr.bf16.mxu0 0
    %310 = vmatmul.mubr.bf16.gmra.mrb[0].mxu0 %v178
    %v311 = vpop.f32.mrb[0].mxu0
    %v312 = vadd.f32 %v272, %v311
    %v313 = vpop.f32.mrb[0].mxu0
    %v314 = vpop.f32.mrb[0].mxu0
    %v315 = vpop.f32.mrb[0].mxu0
    %316 = vdwg.mxu0
    %v317 = vmax.f32 %v312, 0.0
    %318 = vst [vmem:[#allocation10] sm:$0xff] %v317
    // Predicated region
    $region42: #{tpu_custom_call.1} parent=1 // pred_check
      _
    $region43: #{tpu_custom_call.1} parent=1 // pred_check_branch
      %320 = sbr.rel (0) target = $region45
    $region44: #{tpu_custom_call.1} parent=1 // pred_region
      %s322 = ssub.s32 128, 128
      %323 = vsyncadd [#allocation4], %s322
      %s325 = sshll.u32 [#allocation10], 4
      %s326 = int_to_ptr.vmem [resolvable:$true] %s325
      %328 = dma.vmem_to_hbm [thread:$0]  %s326, 128, %s6, [#allocation4]
    $region45: #{tpu_custom_call.1} parent=1 // pred_fallthru
      _
    // Predicated region
    $region46: #{tpu_custom_call.1} parent=1 // pred_check
      _
    $region47: #{tpu_custom_call.1} parent=1 // pred_check_branch
      %330 = sbr.rel (0) target = $region49
    $region48: #{tpu_custom_call.1} parent=1 // pred_region
      %331 = dma.done [#allocation4], 128
    $region49: #{tpu_custom_call.1} parent=1 // pred_fallthru
      _
    %332 = vsyncpa [#allocation3], 1
    %333 = vsyncpa [#allocation6], 1
    %334 = vsyncpa [#allocation9], 1
    %335 = vsyncpa [#allocation4], 1

</llo_original>
